<compile_context>
chip_gen: v5e
topology: v5e:2x2
jax: 0.10.0
libtpu: 0.0.40
codegen_flags: <defaults>
</compile_context>

<pallas_src>
import jax
import jax.numpy as jnp
from jax.experimental import pallas as pl
from jax.experimental.pallas import tpu as pltpu


_LANE = 128
_MIB = 1024 * 1024
# Weight working set (bytes) below which W stays fully VMEM-resident and the
# single-pass fused kernel is used. 16 MiB of bf16 weight covers e.g.
# D=4096 x O_pad=2048 — essentially every real logistic-regression head.
_FUSED_WEIGHT_BUDGET_BYTES = 16 * _MIB


# ----------------------------------------------------------------------------
# Helpers
# ----------------------------------------------------------------------------
def _round_up(x, m):
    return ((x + m - 1) // m) * m


def _largest_divisor_tile(dim, preferred, step):
    """Largest multiple of `step` that is <= preferred and divides `dim`.

    `dim` must be a multiple of `step`, so the result is always >= step —
    never a silent full-dim fallback (VMEM hazard on v7x)."""
    t = min(preferred, dim)
    t = max((t // step) * step, step)
    while t > step and dim % t != 0:
        t -= step
    return t


def _choose_batch_tile(batch, preferred, sublane):
    """Pick (tm, padded_batch): tm is a multiple of `sublane`, divides
    padded_batch, and there are >= 2 batch tiles whenever the batch is big
    enough (so both v7x TensorCores get a 'parallel' tile)."""
    preferred = max((preferred // sublane) * sublane, sublane)
    if batch <= preferred:
        tm = _round_up(max(batch, 1), sublane)
        padded = tm
    else:
        tm = preferred
        padded = _round_up(batch, tm)
    if padded // tm < 2 and padded >= 2 * sublane:
        tm = _round_up((padded + 1) // 2, sublane)
        padded = 2 * tm
    return tm, padded


# ----------------------------------------------------------------------------
# Kernels
# ----------------------------------------------------------------------------
def _fused_kernel(x_ref, w_ref, b_ref, o_ref):
    """Single-pass batch tile; weight (D, O_pad) and bias fully VMEM-resident.

    x_ref : (tm, D)      bf16 activations tile (streamed)
    w_ref : (D,  O_pad)  bf16 weight (resident across the whole grid)
    b_ref : (1,  O_pad)  f32 bias (resident)
    o_ref : (tm, O_pad)  f32 output tile
    """
    z = jnp.dot(x_ref[...], w_ref[...], preferred_element_type=jnp.float32)
    z = z + b_ref[...]
    o_ref[...] = (1.0 / (1.0 + jnp.exp(-z))).astype(o_ref.dtype)


def _tiled_kernel(x_ref, w_ref, b_ref, o_ref):
    """General path: accumulate over the D grid axis directly into the f32
    output tile (it stays VMEM-resident across k since its block index
    ignores k), then fuse bias + sigmoid on the last k step."""
    k = pl.program_id(2)

    @pl.when(k == 0)
    def _init():
        o_ref[...] = jnp.zeros_like(o_ref)

    o_ref[...] += jnp.dot(x_ref[...], w_ref[...],
                          preferred_element_type=jnp.float32)

    @pl.when(k == pl.num_programs(2) - 1)
    def _finalize():
        z = o_ref[...] + b_ref[...]
        o_ref[...] = (1.0 / (1.0 + jnp.exp(-z))).astype(o_ref.dtype)


# ----------------------------------------------------------------------------
# Parameter preparation (one-time, not per call)
# ----------------------------------------------------------------------------
def prepare_params(weight, bias, *, param_dtype=jnp.bfloat16):
    """One-time parameter prep.

    * transposes the PyTorch-layout (O, D) weight to (D, O_pad) so the kernel's
      inner loop is a plain MXU-friendly dot (no rhs transpose in the hot loop),
    * pads O up to a multiple of 128 so output stores are lane-dense,
    * casts the weight to bf16 (f32 accumulation happens in the kernel).

    Returns (weight_t (D, O_pad) bf16, bias_p (1, O_pad) f32, out_features).
    """
    out_features, in_features = weight.shape
    o_pad = _round_up(max(out_features, 1), _LANE)
    weight_t = jnp.zeros((in_features, o_pad), param_dtype)
    weight_t = weight_t.at[:, :out_features].set(weight.T.astype(param_dtype))
    bias_p = jnp.zeros((1, o_pad), jnp.float32)
    bias_p = bias_p.at[0, :out_features].set(bias.astype(jnp.float32))
    return weight_t, bias_p, out_features


# ----------------------------------------------------------------------------
# Forward wrappers
# ----------------------------------------------------------------------------
def _fused_forward(x, weight_t, bias_p, out_features, *, tm, sublane, itemsize):
    batch, d = x.shape
    _, o_pad = weight_t.shape

    tm, padded_batch = _choose_batch_tile(batch, tm, sublane)
    if padded_batch != batch:
        x = jnp.zeros((padded_batch, d), x.dtype).at[:batch, :].set(x)

    grid = (padded_batch // tm,)

    # VMEM working set: double-buffered x / out tiles + resident W and bias.
    vmem_est = (2 * tm * d * itemsize
                + d * o_pad * itemsize
                + o_pad * 4
                + 2 * tm * o_pad * 4)
    compiler_kwargs = dict(dimension_semantics=("parallel",))
    if vmem_est > 16 * _MIB:
        # Raise above v5e's 16 MiB scoped default; keep headroom under v7x's
        # 64 MiB physical VMEM.
        compiler_kwargs["vmem_limit_bytes"] = int(min(vmem_est * 1.5, 48 * _MIB))

    cost = pl.CostEstimate(
        flops=2 * padded_batch * d * o_pad,
        transcendentals=padded_batch * o_pad,
        bytes_accessed=(padded_batch * d * itemsize
                        + d * o_pad * itemsize
                        + o_pad * 4
                        + padded_batch * o_pad * 4),
    )

    out_padded = pl.pallas_call(
        _fused_kernel,
        out_shape=jax.ShapeDtypeStruct((padded_batch, o_pad), jnp.float32),
        grid_spec=pltpu.PrefetchScalarGridSpec(
            num_scalar_prefetch=0,
            grid=grid,
            in_specs=[
                pl.BlockSpec((tm, d), lambda i: (i, 0)),       # x: streamed
                pl.BlockSpec((d, o_pad), lambda i: (0, 0)),    # W: resident
                pl.BlockSpec((1, o_pad), lambda i: (0, 0)),    # b: resident
            ],
            out_specs=pl.BlockSpec((tm, o_pad), lambda i: (i, 0)),
        ),
        compiler_params=pltpu.CompilerParams(**compiler_kwargs),
        cost_estimate=cost,
    )(x, weight_t, bias_p)

    # Padded rows come from zero inputs; padded columns are sigmoid(0)=0.5.
    # Both are sliced off before returning.
    return out_padded[:batch, :out_features]


def _tiled_forward(x, weight_t, bias_p, out_features, *, tm, tn, tk,
                   sublane, itemsize):
    batch, d = x.shape
    _, o_pad = weight_t.shape

    # Pad D to a multiple of 128 so a 128-multiple tk always divides it
    # (never a full-dim reduction block).
    d_pad = _round_up(d, _LANE)
    tk = _largest_divisor_tile(d_pad, tk, _LANE)
    tn = _largest_divisor_tile(o_pad, tn, _LANE)
    tm, padded_batch = _choose_batch_tile(batch, tm, sublane)

    if d_pad != d:
        x = jnp.zeros((batch, d_pad), x.dtype).at[:, :d].set(x)
        weight_t = jnp.zeros((d_pad, o_pad), weight_t.dtype).at[:d, :].set(weight_t)
    if padded_batch != batch:
        x = jnp.zeros((padded_batch, d_pad), x.dtype).at[:batch, :].set(x)

    grid = (padded_batch // tm, o_pad // tn, d_pad // tk)

    vmem_est = (2 * (tm * tk + tk * tn) * itemsize   # double-buffered x, W tiles
                + 2 * tm * tn * 4                    # resident f32 output tile(s)
                + 2 * tn * 4)                        # bias tile
    compiler_kwargs = dict(
        dimension_semantics=("parallel", "parallel", "arbitrary"))
    if vmem_est > 16 * _MIB:
        compiler_kwargs["vmem_limit_bytes"] = int(min(vmem_est * 1.5, 48 * _MIB))

    cost = pl.CostEstimate(
        flops=2 * padded_batch * d_pad * o_pad,
        transcendentals=padded_batch * o_pad,
        bytes_accessed=(padded_batch * d_pad * itemsize * (o_pad // tn)
                        + d_pad * o_pad * itemsize
                        + o_pad * 4
                        + padded_batch * o_pad * 4),
    )

    out_padded = pl.pallas_call(
        _tiled_kernel,
        out_shape=jax.ShapeDtypeStruct((padded_batch, o_pad), jnp.float32),
        grid_spec=pltpu.PrefetchScalarGridSpec(
            num_scalar_prefetch=0,
            grid=grid,
            in_specs=[
                pl.BlockSpec((tm, tk), lambda i, j, k: (i, k)),   # x
                pl.BlockSpec((tk, tn), lambda i, j, k: (k, j)),   # W (D, O_pad)
                pl.BlockSpec((1, tn), lambda i, j, k: (0, j)),    # bias
            ],
            out_specs=pl.BlockSpec((tm, tn), lambda i, j, k: (i, j)),
        ),
        compiler_params=pltpu.CompilerParams(**compiler_kwargs),
        cost_estimate=cost,
    )(x, weight_t, bias_p)

    return out_padded[:batch, :out_features]


def logistic_regression_forward(x, weight_t, bias_p, out_features, *,
                                tm=512, tn=256, tk=1024,
                                fused_weight_budget=_FUSED_WEIGHT_BUDGET_BYTES,
                                force_tiled=False):
    """sigmoid(x @ W.T + b) with W/b already prepared by prepare_params().

    x        : (B, D) float32 (cast to bf16 at the kernel boundary)
    weight_t : (D, O_pad) bf16, O_pad a multiple of 128
    bias_p   : (1, O_pad) float32
    returns  : (B, out_features) float32
    """
    batch, in_features = x.shape
    d_w, o_pad = weight_t.shape
    assert d_w == in_features, (d_w, in_features)
    assert o_pad % _LANE == 0

    compute_dtype = weight_t.dtype
    x = x.astype(compute_dtype)
    itemsize = jnp.dtype(compute_dtype).itemsize
    sublane = 16 if itemsize == 2 else 8

    weight_bytes = in_features * o_pad * itemsize
    if (not force_tiled) and weight_bytes <= fused_weight_budget:
        return _fused_forward(x, weight_t, bias_p, out_features,
                              tm=tm, sublane=sublane, itemsize=itemsize)
    return _tiled_forward(x, weight_t, bias_p, out_features,
                          tm=min(tm, 256), tn=tn, tk=tk,
                          sublane=sublane, itemsize=itemsize)


# ----------------------------------------------------------------------------
# Self-test
# ----------------------------------------------------------------------------
if __name__ == "__main__":
    key = jax.random.PRNGKey(0)

    def make_problem(k, batch, input_size, output_size):
        kx, kw, kb = jax.random.split(k, 3)
        bound = 1.0 / (input_size ** 0.5)
        weight = jax.random.uniform(kw, (output_size, input_size),
                                    minval=-bound, maxval=bound,
                                    dtype=jnp.float32)
        bias = jax.random.uniform(kb, (output_size,),
                                  minval=-bound, maxval=bound,
                                  dtype=jnp.float32)
        x = jax.random.normal(kx, (batch, input_size), dtype=jnp.float32)
        return x, weight, bias

    k1, k2 = jax.random.split(key)

    # 1) Module-sized problem (batch=8, input_size=32, output_size=16):
    #    exercises the fused (weight-resident, 1-D grid) path.
    x, weight, bias = make_problem(k1, batch=8, input_size=32, output_size=16)
    w_t, b_p, o_feat = prepare_params(weight, bias)
    out = jax.block_until_ready(logistic_regression_forward(x, w_t, b_p, o_feat))
    ref = jax.nn.sigmoid(x @ weight.T + bias)
    assert out.shape == ref.shape
    assert jnp.allclose(out, ref, atol=2e-2, rtol=2e-2), \
        float(jnp.max(jnp.abs(out - ref)))

    # 2) Larger problem forced onto the general 3-D tiled path.
    x2, weight2, bias2 = make_problem(k2, batch=256, input_size=512,
                                      output_size=256)
    w_t2, b_p2, o_feat2 = prepare_params(weight2, bias2)
    out2 = jax.block_until_ready(
        logistic_regression_forward(x2, w_t2, b_p2, o_feat2,
                                    tm=128, tn=128, tk=256, force_tiled=True))
    ref2 = jax.nn.sigmoid(x2 @ weight2.T + bias2)
    assert out2.shape == ref2.shape
    assert jnp.allclose(out2, ref2, atol=2e-2, rtol=2e-2), \
        float(jnp.max(jnp.abs(out2 - ref2)))

    print("KERNEL_OK")
</pallas_src>

<mosaic_0001>
module attributes {stable_mosaic.version = 11 : i64} {
  func.func @_fused_kernel(%arg0: i32, %arg1: memref<16x32xbf16, #tpu.memory_space<vmem>>, %arg2: memref<32x128xbf16, #tpu.memory_space<vmem>>, %arg3: memref<1x128xf32, #tpu.memory_space<vmem>>, %arg4: memref<16x128xf32, #tpu.memory_space<vmem>>) attributes {dimension_semantics = [#tpu.dimension_semantics<parallel>], iteration_bounds = array<i64: 1>, scalar_prefetch = 0 : i64, scratch_operands = 0 : i64, tpu.core_type = #tpu.core_type<tc>, window_params = [{transform_indices = @transform_0, window_bounds = array<i64: 16, 32>}, {pipeline_mode = #tpu.pipeline_mode<synchronous>, transform_indices = @transform_1, window_bounds = array<i64: 32, 128>}, {pipeline_mode = #tpu.pipeline_mode<synchronous>, transform_indices = @transform_2, window_bounds = array<i64: 1, 128>}, {transform_indices = @transform_3, window_bounds = array<i64: 16, 128>}]} {
    %c0 = arith.constant 0 : index
    %c0_0 = arith.constant 0 : index
    %0 = vector.load %arg1[%c0, %c0_0] : memref<16x32xbf16, #tpu.memory_space<vmem>>, vector<16x32xbf16>
    %c0_1 = arith.constant 0 : index
    %c0_2 = arith.constant 0 : index
    %1 = vector.load %arg2[%c0_1, %c0_2] : memref<32x128xbf16, #tpu.memory_space<vmem>>, vector<32x128xbf16>
    %cst = arith.constant dense<0.000000e+00> : vector<16x128xf32>
    %2 = tpu.matmul %0, %1, %cst {dimension_numbers = #tpu.dot_dimension_numbers<[1], [0], [0], [1], [0, 0, 1, 1], [], []>} : vector<16x32xbf16>, vector<32x128xbf16>, vector<16x128xf32> -> vector<16x128xf32>
    %c0_3 = arith.constant 0 : index
    %c0_4 = arith.constant 0 : index
    %3 = vector.load %arg3[%c0_3, %c0_4] : memref<1x128xf32, #tpu.memory_space<vmem>>, vector<1x128xf32>
    %4 = vector.broadcast %3 : vector<1x128xf32> to vector<16x128xf32>
    %5 = arith.addf %2, %4 : vector<16x128xf32>
    %cst_5 = arith.constant 0.000000e+00 : f32
    %6 = vector.broadcast %cst_5 : f32 to vector<16x128xf32>
    %7 = arith.subf %6, %5 : vector<16x128xf32>
    %8 = math.exp %7 : vector<16x128xf32>
    %cst_6 = arith.constant 1.000000e+00 : f32
    %9 = vector.broadcast %cst_6 : f32 to vector<16x128xf32>
    %10 = arith.addf %9, %8 : vector<16x128xf32>
    %cst_7 = arith.constant 1.000000e+00 : f32
    %11 = vector.broadcast %cst_7 : f32 to vector<16x128xf32>
    %12 = arith.divf %11, %10 : vector<16x128xf32>
    %c0_8 = arith.constant 0 : index
    %c0_9 = arith.constant 0 : index
    %13 = vector.load %arg4[%c0_8, %c0_9] : memref<16x128xf32, #tpu.memory_space<vmem>>, vector<16x128xf32>
    tpu.vector_store %arg4[%c0_8, %c0_9], %12 {strides = array<i32>} : memref<16x128xf32, #tpu.memory_space<vmem>>, vector<16x128xf32>,
    return
  }
  func.func @transform_0(%arg0: i32) -> (i32, i32) {
    %c0_i32 = arith.constant 0 : i32
    %c0_i32_0 = arith.constant 0 : i32
    return %arg0, %c0_i32 : i32, i32
  }
  func.func @transform_1(%arg0: i32) -> (i32, i32) {
    %c0_i32 = arith.constant 0 : i32
    %c0_i32_0 = arith.constant 0 : i32
    %c0_i32_1 = arith.constant 0 : i32
    return %c0_i32, %c0_i32_0 : i32, i32
  }
  func.func @transform_2(%arg0: i32) -> (i32, i32) {
    %c0_i32 = arith.constant 0 : i32
    %c0_i32_0 = arith.constant 0 : i32
    %c0_i32_1 = arith.constant 0 : i32
    return %c0_i32, %c0_i32_0 : i32, i32
  }
  func.func @transform_3(%arg0: i32) -> (i32, i32) {
    %c0_i32 = arith.constant 0 : i32
    %c0_i32_0 = arith.constant 0 : i32
    return %arg0, %c0_i32 : i32, i32
  }
}

</mosaic_0001>

<llo_original>
// kernel: tpu_custom_call.1
$region0: #{tpu_custom_call.1}
  #allocation0 [shape = 'u32[]', space=smem, size = 0x4, offset = 0x4, fixed_abs, tag = 'smem constant byte address 0x4 - core index']
  #allocation1 [shape = 'u32[72,128]{1,0:T(1,128)}', space=vmem, size = 0x9000, scoped, tag = 'internal scratch']
  %s0 = inlined_call_operand.hbm [shape: bf16[16,32], index: 0, kind: input, shape index: {}]
  %s1 = inlined_call_operand.hbm [shape: bf16[32,128], index: 1, kind: input, shape index: {}]
  %s2 = inlined_call_operand.vmem [shape: f32[1,128], index: 2, kind: input, shape index: {}]
  %s3 = inlined_call_operand.hbm [shape: f32[16,128], index: 3, kind: output, shape index: {}]
  %s4 = sld [smem:[#allocation0]]
  $region30: #{tpu_custom_call.1} parent=0
    _
  %s6 = ssub.s32 1, %s4
  %s7 = scalar_select 0, %s6, %s4
  $region1: #{tpu_custom_call.1} parent=0
    #allocation2 [shape = 'u8[4096]{0}', space=vmem, size = 0x1000, scoped, tag = 'input window, operand 0, single buffered']
    #allocation3 [shape = 's32[1]{0}', space=sflag, size = 0x4, scoped, tag = 'scoped memory for tpu_custom_call.1']
    #allocation4 [shape = 's32[1]{0}', space=sflag, size = 0x4, scoped, tag = 'scoped memory for tpu_custom_call.1']
    #allocation5 [shape = 'u8[8192]{0}', space=vmem, size = 0x2000, scoped, tag = 'input window, operand 1, single buffered']
    #allocation6 [shape = 's32[1]{0}', space=sflag, size = 0x4, scoped, tag = 'scoped memory for tpu_custom_call.1']
    #allocation7 [shape = 'u8[8192]{0}', space=vmem, size = 0x2000, scoped, tag = 'output window, operand 0, single buffered']
    %8 = vsyncpa [#allocation3], 0
    %9 = vsyncpa [#allocation6], 0
    %10 = vsyncpa [#allocation4], 0
    // Predicated region
    $region2: #{tpu_custom_call.1} parent=1 // pred_check
      _
    $region3: #{tpu_custom_call.1} parent=1 // pred_check_branch
      %12 = sbr.rel (0) target = $region5
    $region4: #{tpu_custom_call.1} parent=1 // pred_region
      %14 = vsyncadd [#allocation3], 0
      %s15 = sshll.u32 %s0, 4
      %s16 = int_to_ptr.hbm [resolvable:$true] %s15
      %s17 = sshll.u32 [#allocation2], 4
      %s18 = int_to_ptr.vmem [resolvable:$true] %s17
      %23 = dma.hbm_to_vmem [thread:$0]  %s16, 128, %s18, [#allocation3], 64, 64, 4
    $region5: #{tpu_custom_call.1} parent=1 // pred_fallthru
      _
    // Predicated region
    $region6: #{tpu_custom_call.1} parent=1 // pred_check
      _
    $region7: #{tpu_custom_call.1} parent=1 // pred_check_branch
      %25 = sbr.rel (0) target = $region9
    $region8: #{tpu_custom_call.1} parent=1 // pred_region
      %27 = vsyncadd [#allocation6], 0
      %s28 = sshll.u32 %s1, 4
      %s29 = int_to_ptr.hbm [resolvable:$true] %s28
      %s30 = sshll.u32 [#allocation5], 4
      %s31 = int_to_ptr.vmem [resolvable:$true] %s30
      %36 = dma.hbm_to_vmem [thread:$0]  %s29, 256, %s31, [#allocation6], 64, 64, 4
    $region9: #{tpu_custom_call.1} parent=1 // pred_fallthru
      _
    // Predicated region
    $region10: #{tpu_custom_call.1} parent=1 // pred_check
      _
    $region11: #{tpu_custom_call.1} parent=1 // pred_check_branch
      %38 = sbr.rel (0) target = $region13
    $region12: #{tpu_custom_call.1} parent=1 // pred_region
      _
    $region13: #{tpu_custom_call.1} parent=1 // pred_fallthru
      _
    // Predicated region
    $region14: #{tpu_custom_call.1} parent=1 // pred_check
      _
    $region15: #{tpu_custom_call.1} parent=1 // pred_check_branch
      %40 = sbr.rel (0) target = $region17
    $region16: #{tpu_custom_call.1} parent=1 // pred_region
      %42 = dma.done [#allocation3], 128
    $region17: #{tpu_custom_call.1} parent=1 // pred_fallthru
      _
    // Predicated region
    $region18: #{tpu_custom_call.1} parent=1 // pred_check
      _
    $region19: #{tpu_custom_call.1} parent=1 // pred_check_branch
      %44 = sbr.rel (0) target = $region21
    $region20: #{tpu_custom_call.1} parent=1 // pred_region
      %46 = dma.done [#allocation6], 256
    $region21: #{tpu_custom_call.1} parent=1 // pred_fallthru
      _
    %v48 = vld [vmem:[#allocation2] sm:$0xf]
    %v49 = vld [vmem:[#allocation2 + $0x4] sm:$0xf]
    %v50 = vld [vmem:[#allocation5] sm:$0xf]
    %v51 = vld [vmem:[#allocation5 + $0x4] sm:$0xf]
    %v52 = vld [vmem:[#allocation5 + $0x8] sm:$0xf]
    %v53 = vld [vmem:[#allocation5 + $0xc] sm:$0xf]
    %v54 = vld [vmem:[%s2] sm:$0x1]
    %v56 = vperm.slane %v54, 0
    %v60 = vunpack.c.l.b16 %v48
    %v61 = vunpack.c.l.b16 %v49
    %v62 = vpack.c.b16 %v61, %v60
    %v67 = vunpack.c.l.b16 %v50
    %v68 = vunpack.c.l.b16 %v51
    %v69 = vunpack.c.l.b16 %v52
    %v70 = vunpack.c.l.b16 %v53
    %v71 = vpack.c.b16 %v68, %v67
    %v72 = vpack.c.b16 %v70, %v69
    %vm75 = vcmask 261120
    %v77 = vsel %vm75, %v62, 0
    %79 = vmatpush.bf16.msra.mxu0 0
    %80 = vmatpush.bf16.msra.mxu0 0
    %81 = vmatpush.bf16.msra.mxu0 0
    %82 = vmatpush.bf16.msra.mxu0 0
    %83 = vmatpush.bf16.msra.mxu0 0
    %84 = vmatpush.bf16.msra.mxu0 0
    %85 = vmatpush.bf16.msra.mxu0 %v72
    %86 = vmatpush.bf16.msra.mxu0 %v71
    %87 = vmatmul.bf16.gmra.mxu0 %v77
    %v88 = vpop.f32.mrf.mxu0
    %v89 = vadd.f32 %v56, %v88
    %v90 = vpop.f32.mrf.mxu0
    %v91 = vadd.f32 %v56, %v90
    %92 = vdwg.mxu0
    %v93 = vsub.f32 0.0, %v89
    %v94 = vsub.f32 0.0, %v91
    %v95 = vmul.f32 %v93, 1.442695
    %v96 = vpow.pop %v95
    %v97 = vmul.f32 %v94, 1.442695
    %v98 = vpow.pop %v97
    %v99 = vadd.f32 %v96, 1.0
    %v100 = vadd.f32 %v98, 1.0
    %v101 = vrcp.pop %v99
    %v102 = vmul.f32 %v99, %v101
    %v103 = vsub.f32 1.0, %v102
    %v104 = vmul.f32 %v101, %v103
    %v105 = vadd.f32 %v101, %v104
    %vm106 = vweird.f32 %v99
    %vm107 = vweird.f32 %v101
    %vm108 = vmor %vm106, %vm107
    %v109 = vsel %vm108, %v101, %v105
    %v110 = vand.u32 2147483647, %v99
    %vm111 = vcmp.eq.f32.partialorder %v110, 8.507059e+37
    %v112 = vand.u32 %v99, 2147483648
    %v113 = vor.u32 1.1754944e-38, %v112
    %v114 = vsel %vm111, %v113, %v109
    %v115 = vmul.f32 1.0, %v114
    %v116 = vrcp.pop %v100
    %v117 = vmul.f32 %v100, %v116
    %v118 = vsub.f32 1.0, %v117
    %v119 = vmul.f32 %v116, %v118
    %v120 = vadd.f32 %v116, %v119
    %vm121 = vweird.f32 %v100
    %vm122 = vweird.f32 %v116
    %vm123 = vmor %vm121, %vm122
    %v124 = vsel %vm123, %v116, %v120
    %v125 = vand.u32 2147483647, %v100
    %vm126 = vcmp.eq.f32.partialorder %v125, 8.507059e+37
    %v127 = vand.u32 %v100, 2147483648
    %v128 = vor.u32 1.1754944e-38, %v127
    %v129 = vsel %vm126, %v128, %v124
    %v130 = vmul.f32 1.0, %v129
    %131 = vst [vmem:[#allocation7] sm:$0xff] %v115
    %132 = vst [vmem:[#allocation7 + $0x8] sm:$0xff] %v130
    // Predicated region
    $region22: #{tpu_custom_call.1} parent=1 // pred_check
      _
    $region23: #{tpu_custom_call.1} parent=1 // pred_check_branch
      %134 = sbr.rel (0) target = $region25
    $region24: #{tpu_custom_call.1} parent=1 // pred_region
      %136 = vsyncadd [#allocation4], 0
      %s137 = sshll.u32 [#allocation7], 4
      %s138 = int_to_ptr.vmem [resolvable:$true] %s137
      %s139 = sshll.u32 %s3, 4
      %s140 = int_to_ptr.hbm [resolvable:$true] %s139
      %145 = dma.vmem_to_hbm [thread:$0]  %s138, 256, %s140, [#allocation4], 128, 128, 8
    $region25: #{tpu_custom_call.1} parent=1 // pred_fallthru
      _
    // Predicated region
    $region26: #{tpu_custom_call.1} parent=1 // pred_check
      _
    $region27: #{tpu_custom_call.1} parent=1 // pred_check_branch
      %147 = sbr.rel (0) target = $region29
    $region28: #{tpu_custom_call.1} parent=1 // pred_region
      %149 = dma.done [#allocation4], 256
    $region29: #{tpu_custom_call.1} parent=1 // pred_fallthru
      _
    %150 = vsyncpa [#allocation3], 1
    %151 = vsyncpa [#allocation6], 1
    %152 = vsyncpa [#allocation4], 1

</llo_original>
